<compile_context>
chip_gen: v5e
topology: v5e:2x2
jax: 0.10.0
libtpu: 0.0.40
codegen_flags: <defaults>
</compile_context>

<pallas_src>
import jax
import jax.numpy as jnp
from jax.experimental import pallas as pl
from jax.experimental.pallas import tpu as pltpu


def _round_up(x, m):
    return (x + m - 1) // m * m


def _t2o_kernel(x_ref, w_ref, b_ref, o_ref):
    # x_ref: (TN, Fp) f32   w_ref: (Fp, OUT) bf16   b_ref: (1, OUT) f32
    # o_ref: (TN, OUT) f32
    x = x_ref[...].astype(jnp.bfloat16)            # bf16-native MXU operands
    y = jnp.dot(x, w_ref[...], preferred_element_type=jnp.float32)
    o_ref[...] = jnp.maximum(y + b_ref[...], 0.0).astype(o_ref.dtype)


def fold_t2o_weights(conv_w, conv_b, lin_w, lin_b, L):
    """Fold Conv1d + Flatten + Linear into one affine map (exact in f32).

    Returns W_eff (Cin*L, OUT) and b_eff (OUT,) such that
        T2O(x) == relu(x.reshape(N, Cin*L) @ W_eff + b_eff).
    """
    Cout, Cin, K = conv_w.shape
    OUT = lin_w.shape[0]
    Lout = L - K + 1
    lin_w3 = lin_w.reshape(OUT, Cout, Lout)                  # [j, o, t]
    w_eff = jnp.zeros((Cin, L, OUT), jnp.float32)
    for k in range(K):                                       # K == 10, static
        # conv tap k contributes: w_eff[c, t+k, j] += conv_w[o,c,k]*lin_w3[j,o,t]
        contrib = jnp.einsum("oc,jot->ctj", conv_w[:, :, k], lin_w3)
        w_eff = w_eff.at[:, k:k + Lout, :].add(contrib)
    w_eff = w_eff.reshape(Cin * L, OUT)
    b_eff = jnp.einsum("o,jo->j", conv_b, lin_w3.sum(axis=-1)) + lin_b
    return w_eff, b_eff


def t2o_forward(x_ncl, conv_w, conv_b, lin_w, lin_b, *, block_n=256):
    """Forward pass of T2O.

    x_ncl : (N, Cin, L) float32   -- PyTorch NCL input layout
    conv_w: (Cout, Cin, K)        -- PyTorch Conv1d weight
    conv_b: (Cout,)
    lin_w : (OUT, Cout*Lout)      -- PyTorch Linear weight
    lin_b : (OUT,)
    returns (N, OUT) float32
    """
    N, Cin, L = x_ncl.shape
    OUT = lin_w.shape[0]

    # One-time weight prep: affine fold + bf16 quantization of the big weight.
    w_eff, b_eff = fold_t2o_weights(conv_w, conv_b, lin_w, lin_b, L)

    # Lane-dense, 128-aligned contraction (zero padding is exact).
    F = Cin * L
    Fp = _round_up(F, 128)
    x_flat = x_ncl.reshape(N, F)
    if Fp != F:
        x_flat = jnp.pad(x_flat, ((0, 0), (0, Fp - F)))
        w_eff = jnp.pad(w_eff, ((0, Fp - F), (0, 0)))
    w_q = w_eff.astype(jnp.bfloat16)
    b2 = b_eff.reshape(1, OUT).astype(jnp.float32)

    # Tile the batch; keep weight/bias resident across grid steps.
    bn = min(block_n, _round_up(N, 8))
    Np = _round_up(N, bn)
    if Np != N:
        x_flat = jnp.pad(x_flat, ((0, Np - N), (0, 0)))

    out = pl.pallas_call(
        _t2o_kernel,
        out_shape=jax.ShapeDtypeStruct((Np, OUT), jnp.float32),
        grid=(Np // bn,),
        in_specs=[
            pl.BlockSpec((bn, Fp), lambda i: (i, 0)),    # per-step x tile
            pl.BlockSpec((Fp, OUT), lambda i: (0, 0)),   # resident weight
            pl.BlockSpec((1, OUT), lambda i: (0, 0)),    # resident bias
        ],
        out_specs=pl.BlockSpec((bn, OUT), lambda i: (i, 0)),
        compiler_params=pltpu.CompilerParams(
            dimension_semantics=("parallel",)),
    )(x_flat, w_q, b2)
    return out[:N]


if __name__ == "__main__":
    # Small shapes consistent with the module: EMBEDDDIM = (Cin, L).
    args = {"EMBEDDDIM": (4, 25)}          # Cin=4, L=25 -> Lout=16, 32*16=512
    Cin, L = args["EMBEDDDIM"]
    K, Cout, OUT = 10, 32, 1024
    Lout = L - K + 1
    N = 2

    key = jax.random.PRNGKey(0)
    k1, k2, k3, k4, k5 = jax.random.split(key, 5)
    x = jax.random.normal(k1, (N, Cin, L), jnp.float32)
    conv_w = 0.10 * jax.random.normal(k2, (Cout, Cin, K), jnp.float32)
    conv_b = 0.10 * jax.random.normal(k3, (Cout,), jnp.float32)
    lin_w = 0.05 * jax.random.normal(k4, (OUT, Cout * Lout), jnp.float32)
    lin_b = 0.05 * jax.random.normal(k5, (OUT,), jnp.float32)

    out = jax.block_until_ready(t2o_forward(x, conv_w, conv_b, lin_w, lin_b))
    assert out.shape == (N, OUT), out.shape

    # (1) Tight check against the kernel's exact math (bf16 weight, f32 accum).
    w_eff, b_eff = fold_t2o_weights(conv_w, conv_b, lin_w, lin_b, L)
    ref_kernel = jnp.maximum(
        jnp.dot(x.reshape(N, Cin * L).astype(jnp.bfloat16),
                w_eff.astype(jnp.bfloat16),
                preferred_element_type=jnp.float32) + b_eff, 0.0)
    assert jnp.allclose(out, ref_kernel, atol=1e-4, rtol=1e-4), float(
        jnp.max(jnp.abs(out - ref_kernel)))

    # (2) Semantic check against the exact PyTorch-style f32 reference
    #     (tolerance reflects the bf16 weight quantization only).
    patches = jnp.stack([x[:, :, t:t + K] for t in range(Lout)], axis=1)  # (N,Lout,Cin,K)
    conv = jnp.einsum("ntck,ock->nto", patches, conv_w) + conv_b          # (N,Lout,Cout)
    flat = conv.transpose(0, 2, 1).reshape(N, -1)                         # PyTorch Flatten (NCL)
    ref = jnp.maximum(flat @ lin_w.T + lin_b, 0.0)
    assert jnp.allclose(out, ref, atol=2e-2, rtol=2e-2), float(
        jnp.max(jnp.abs(out - ref)))

    print("KERNEL_OK")
</pallas_src>

<mosaic_0001>
module attributes {stable_mosaic.version = 11 : i64} {
  func.func @_t2o_kernel(%arg0: i32, %arg1: memref<8x128xf32, #tpu.memory_space<vmem>>, %arg2: memref<128x1024xbf16, #tpu.memory_space<vmem>>, %arg3: memref<1x1024xf32, #tpu.memory_space<vmem>>, %arg4: memref<8x1024xf32, #tpu.memory_space<vmem>>) attributes {dimension_semantics = [#tpu.dimension_semantics<parallel>], iteration_bounds = array<i64: 1>, scalar_prefetch = 0 : i64, scratch_operands = 0 : i64, tpu.core_type = #tpu.core_type<tc>, window_params = [{transform_indices = @transform_0, window_bounds = array<i64: 8, 128>}, {pipeline_mode = #tpu.pipeline_mode<synchronous>, transform_indices = @transform_1, window_bounds = array<i64: 128, 1024>}, {pipeline_mode = #tpu.pipeline_mode<synchronous>, transform_indices = @transform_2, window_bounds = array<i64: 1, 1024>}, {transform_indices = @transform_3, window_bounds = array<i64: 8, 1024>}]} {
    %c0 = arith.constant 0 : index
    %c0_0 = arith.constant 0 : index
    %0 = vector.load %arg1[%c0, %c0_0] : memref<8x128xf32, #tpu.memory_space<vmem>>, vector<8x128xf32>
    %1 = arith.truncf %0 : vector<8x128xf32> to vector<8x128xbf16>
    %c0_1 = arith.constant 0 : index
    %c0_2 = arith.constant 0 : index
    %2 = vector.load %arg2[%c0_1, %c0_2] : memref<128x1024xbf16, #tpu.memory_space<vmem>>, vector<128x1024xbf16>
    %cst = arith.constant dense<0.000000e+00> : vector<8x1024xf32>
    %3 = tpu.matmul %1, %2, %cst {dimension_numbers = #tpu.dot_dimension_numbers<[1], [0], [0], [1], [0, 0, 1, 1], [], []>} : vector<8x128xbf16>, vector<128x1024xbf16>, vector<8x1024xf32> -> vector<8x1024xf32>
    %c0_3 = arith.constant 0 : index
    %c0_4 = arith.constant 0 : index
    %4 = vector.load %arg3[%c0_3, %c0_4] : memref<1x1024xf32, #tpu.memory_space<vmem>>, vector<1x1024xf32>
    %5 = vector.broadcast %4 : vector<1x1024xf32> to vector<8x1024xf32>
    %6 = arith.addf %3, %5 : vector<8x1024xf32>
    %cst_5 = arith.constant 0.000000e+00 : f32
    %7 = vector.broadcast %cst_5 : f32 to vector<8x1024xf32>
    %8 = arith.maximumf %6, %7 : vector<8x1024xf32>
    %c0_6 = arith.constant 0 : index
    %c0_7 = arith.constant 0 : index
    %9 = vector.load %arg4[%c0_6, %c0_7] : memref<8x1024xf32, #tpu.memory_space<vmem>>, vector<8x1024xf32>
    tpu.vector_store %arg4[%c0_6, %c0_7], %8 {strides = array<i32>} : memref<8x1024xf32, #tpu.memory_space<vmem>>, vector<8x1024xf32>,
    return
  }
  func.func @transform_0(%arg0: i32) -> (i32, i32) {
    %c0_i32 = arith.constant 0 : i32
    %c0_i32_0 = arith.constant 0 : i32
    return %arg0, %c0_i32 : i32, i32
  }
  func.func @transform_1(%arg0: i32) -> (i32, i32) {
    %c0_i32 = arith.constant 0 : i32
    %c0_i32_0 = arith.constant 0 : i32
    %c0_i32_1 = arith.constant 0 : i32
    return %c0_i32, %c0_i32_0 : i32, i32
  }
  func.func @transform_2(%arg0: i32) -> (i32, i32) {
    %c0_i32 = arith.constant 0 : i32
    %c0_i32_0 = arith.constant 0 : i32
    %c0_i32_1 = arith.constant 0 : i32
    return %c0_i32, %c0_i32_0 : i32, i32
  }
  func.func @transform_3(%arg0: i32) -> (i32, i32) {
    %c0_i32 = arith.constant 0 : i32
    %c0_i32_0 = arith.constant 0 : i32
    return %arg0, %c0_i32 : i32, i32
  }
}

</mosaic_0001>

<llo_original>
// kernel: tpu_custom_call.1
$region0: #{tpu_custom_call.1}
  #allocation0 [shape = 'u32[]', space=smem, size = 0x4, offset = 0x4, fixed_abs, tag = 'smem constant byte address 0x4 - core index']
  #allocation1 [shape = 'u32[72,128]{1,0:T(1,128)}', space=vmem, size = 0x9000, scoped, tag = 'internal scratch']
  %s0 = inlined_call_operand.hbm [shape: f32[8,128], index: 0, kind: input, shape index: {}]
  %s1 = inlined_call_operand.hbm [shape: bf16[128,1024], index: 1, kind: input, shape index: {}]
  %s2 = inlined_call_operand.hbm [shape: f32[1,1024], index: 2, kind: input, shape index: {}]
  %s3 = inlined_call_operand.hbm [shape: f32[8,1024], index: 3, kind: output, shape index: {}]
  %s4 = sld [smem:[#allocation0]]
  $region34: #{tpu_custom_call.1} parent=0
    _
  %s6 = ssub.s32 1, %s4
  %s7 = scalar_select 0, %s6, %s4
  $region1: #{tpu_custom_call.1} parent=0
    #allocation2 [shape = 'u8[4096]{0}', space=vmem, size = 0x1000, scoped, tag = 'input window, operand 0, single buffered']
    #allocation3 [shape = 's32[1]{0}', space=sflag, size = 0x4, scoped, tag = 'scoped memory for tpu_custom_call.1']
    #allocation4 [shape = 's32[1]{0}', space=sflag, size = 0x4, scoped, tag = 'scoped memory for tpu_custom_call.1']
    #allocation5 [shape = 'u8[262144]{0}', space=vmem, size = 0x40000, scoped, tag = 'input window, operand 1, single buffered']
    #allocation6 [shape = 's32[1]{0}', space=sflag, size = 0x4, scoped, tag = 'scoped memory for tpu_custom_call.1']
    #allocation7 [shape = 'u8[4096]{0}', space=vmem, size = 0x1000, scoped, tag = 'input window, operand 2, single buffered']
    #allocation8 [shape = 'u8[32768]{0}', space=vmem, size = 0x8000, scoped, tag = 'output window, operand 0, single buffered']
    %8 = vsyncpa [#allocation3], 0
    %9 = vsyncpa [#allocation6], 0
    %10 = vsyncpa [#allocation4], 0
    // Predicated region
    $region2: #{tpu_custom_call.1} parent=1 // pred_check
      _
    $region3: #{tpu_custom_call.1} parent=1 // pred_check_branch
      %12 = sbr.rel (0) target = $region5
    $region4: #{tpu_custom_call.1} parent=1 // pred_region
      %14 = vsyncadd [#allocation3], 0
      %s16 = sshll.u32 %s0, 4
      %s17 = int_to_ptr.hbm [resolvable:$true] %s16
      %s18 = sshll.u32 [#allocation2], 4
      %s19 = int_to_ptr.vmem [resolvable:$true] %s18
      %21 = dma.hbm_to_vmem [thread:$0]  %s17, 128, %s19, [#allocation3]
    $region5: #{tpu_custom_call.1} parent=1 // pred_fallthru
      _
    // Predicated region
    $region6: #{tpu_custom_call.1} parent=1 // pred_check
      _
    $region7: #{tpu_custom_call.1} parent=1 // pred_check_branch
      %23 = sbr.rel (0) target = $region9
    $region8: #{tpu_custom_call.1} parent=1 // pred_region
      %25 = vsyncadd [#allocation6], 0
      %s26 = sshll.u32 %s1, 4
      %s27 = int_to_ptr.hbm [resolvable:$true] %s26
      %s28 = sshll.u32 [#allocation5], 4
      %s29 = int_to_ptr.vmem [resolvable:$true] %s28
      %34 = dma.hbm_to_vmem [thread:$0]  %s27, 8192, %s29, [#allocation6], 512, 512, 32
    $region9: #{tpu_custom_call.1} parent=1 // pred_fallthru
      _
    // Predicated region
    $region10: #{tpu_custom_call.1} parent=1 // pred_check
      _
    $region11: #{tpu_custom_call.1} parent=1 // pred_check_branch
      %36 = sbr.rel (0) target = $region13
    $region12: #{tpu_custom_call.1} parent=1 // pred_region
      %38 = vsyncadd [#allocation6], 0
      %s40 = sshll.u32 %s2, 4
      %s41 = int_to_ptr.hbm [resolvable:$true] %s40
      %s42 = sshll.u32 [#allocation7], 4
      %s43 = int_to_ptr.vmem [resolvable:$true] %s42
      %45 = dma.hbm_to_vmem [thread:$0]  %s41, 128, %s43, [#allocation6]
    $region13: #{tpu_custom_call.1} parent=1 // pred_fallthru
      _
    // Predicated region
    $region14: #{tpu_custom_call.1} parent=1 // pred_check
      _
    $region15: #{tpu_custom_call.1} parent=1 // pred_check_branch
      %47 = sbr.rel (0) target = $region17
    $region16: #{tpu_custom_call.1} parent=1 // pred_region
      %49 = dma.done [#allocation3], 128
    $region17: #{tpu_custom_call.1} parent=1 // pred_fallthru
      _
    // Predicated region
    $region18: #{tpu_custom_call.1} parent=1 // pred_check
      _
    $region19: #{tpu_custom_call.1} parent=1 // pred_check_branch
      %51 = sbr.rel (0) target = $region21
    $region20: #{tpu_custom_call.1} parent=1 // pred_region
      %53 = dma.done [#allocation6], 8192
    $region21: #{tpu_custom_call.1} parent=1 // pred_fallthru
      _
    // Predicated region
    $region22: #{tpu_custom_call.1} parent=1 // pred_check
      _
    $region23: #{tpu_custom_call.1} parent=1 // pred_check_branch
      %55 = sbr.rel (0) target = $region25
    $region24: #{tpu_custom_call.1} parent=1 // pred_region
      %57 = dma.done [#allocation6], 128
    $region25: #{tpu_custom_call.1} parent=1 // pred_fallthru
      _
    %v58 = vld [vmem:[#allocation2] sm:$0xff]
    %v59 = vpack.c.bf16 %v58, %v58
    %v60 = vld [vmem:[#allocation5] sm:$0xff]
    %v61 = vld [vmem:[#allocation5 + $0x8] sm:$0xff]
    %v62 = vld [vmem:[#allocation5 + $0x10] sm:$0xff]
    %v63 = vld [vmem:[#allocation5 + $0x18] sm:$0xff]
    %v64 = vld [vmem:[#allocation5 + $0x20] sm:$0xff]
    %v65 = vld [vmem:[#allocation5 + $0x28] sm:$0xff]
    %v66 = vld [vmem:[#allocation5 + $0x30] sm:$0xff]
    %v67 = vld [vmem:[#allocation5 + $0x38] sm:$0xff]
    %v68 = vld [vmem:[#allocation5 + $0x40] sm:$0xff]
    %v69 = vld [vmem:[#allocation5 + $0x48] sm:$0xff]
    %v70 = vld [vmem:[#allocation5 + $0x50] sm:$0xff]
    %v71 = vld [vmem:[#allocation5 + $0x58] sm:$0xff]
    %v72 = vld [vmem:[#allocation5 + $0x60] sm:$0xff]
    %v73 = vld [vmem:[#allocation5 + $0x68] sm:$0xff]
    %v74 = vld [vmem:[#allocation5 + $0x70] sm:$0xff]
    %v75 = vld [vmem:[#allocation5 + $0x78] sm:$0xff]
    %v76 = vld [vmem:[#allocation5 + $0x80] sm:$0xff]
    %v77 = vld [vmem:[#allocation5 + $0x88] sm:$0xff]
    %v78 = vld [vmem:[#allocation5 + $0x90] sm:$0xff]
    %v79 = vld [vmem:[#allocation5 + $0x98] sm:$0xff]
    %v80 = vld [vmem:[#allocation5 + $0xa0] sm:$0xff]
    %v81 = vld [vmem:[#allocation5 + $0xa8] sm:$0xff]
    %v82 = vld [vmem:[#allocation5 + $0xb0] sm:$0xff]
    %v83 = vld [vmem:[#allocation5 + $0xb8] sm:$0xff]
    %v84 = vld [vmem:[#allocation5 + $0xc0] sm:$0xff]
    %v85 = vld [vmem:[#allocation5 + $0xc8] sm:$0xff]
    %v86 = vld [vmem:[#allocation5 + $0xd0] sm:$0xff]
    %v87 = vld [vmem:[#allocation5 + $0xd8] sm:$0xff]
    %v88 = vld [vmem:[#allocation5 + $0xe0] sm:$0xff]
    %v89 = vld [vmem:[#allocation5 + $0xe8] sm:$0xff]
    %v90 = vld [vmem:[#allocation5 + $0xf0] sm:$0xff]
    %v91 = vld [vmem:[#allocation5 + $0xf8] sm:$0xff]
    %v92 = vld [vmem:[#allocation5 + $0x100] sm:$0xff]
    %v93 = vld [vmem:[#allocation5 + $0x108] sm:$0xff]
    %v94 = vld [vmem:[#allocation5 + $0x110] sm:$0xff]
    %v95 = vld [vmem:[#allocation5 + $0x118] sm:$0xff]
    %v96 = vld [vmem:[#allocation5 + $0x120] sm:$0xff]
    %v97 = vld [vmem:[#allocation5 + $0x128] sm:$0xff]
    %v98 = vld [vmem:[#allocation5 + $0x130] sm:$0xff]
    %v99 = vld [vmem:[#allocation5 + $0x138] sm:$0xff]
    %v100 = vld [vmem:[#allocation5 + $0x140] sm:$0xff]
    %v101 = vld [vmem:[#allocation5 + $0x148] sm:$0xff]
    %v102 = vld [vmem:[#allocation5 + $0x150] sm:$0xff]
    %v103 = vld [vmem:[#allocation5 + $0x158] sm:$0xff]
    %v104 = vld [vmem:[#allocation5 + $0x160] sm:$0xff]
    %v105 = vld [vmem:[#allocation5 + $0x168] sm:$0xff]
    %v106 = vld [vmem:[#allocation5 + $0x170] sm:$0xff]
    %v107 = vld [vmem:[#allocation5 + $0x178] sm:$0xff]
    %v108 = vld [vmem:[#allocation5 + $0x180] sm:$0xff]
    %v109 = vld [vmem:[#allocation5 + $0x188] sm:$0xff]
    %v110 = vld [vmem:[#allocation5 + $0x190] sm:$0xff]
    %v111 = vld [vmem:[#allocation5 + $0x198] sm:$0xff]
    %v112 = vld [vmem:[#allocation5 + $0x1a0] sm:$0xff]
    %v113 = vld [vmem:[#allocation5 + $0x1a8] sm:$0xff]
    %v114 = vld [vmem:[#allocation5 + $0x1b0] sm:$0xff]
    %v115 = vld [vmem:[#allocation5 + $0x1b8] sm:$0xff]
    %v116 = vld [vmem:[#allocation5 + $0x1c0] sm:$0xff]
    %v117 = vld [vmem:[#allocation5 + $0x1c8] sm:$0xff]
    %v118 = vld [vmem:[#allocation5 + $0x1d0] sm:$0xff]
    %v119 = vld [vmem:[#allocation5 + $0x1d8] sm:$0xff]
    %v120 = vld [vmem:[#allocation5 + $0x1e0] sm:$0xff]
    %v121 = vld [vmem:[#allocation5 + $0x1e8] sm:$0xff]
    %v122 = vld [vmem:[#allocation5 + $0x1f0] sm:$0xff]
    %v123 = vld [vmem:[#allocation5 + $0x1f8] sm:$0xff]
    %v124 = vld [vmem:[#allocation7] sm:$0xff]
    %v126 = vperm.slane %v124, 0
    %v127 = vperm.slane %v124, 1
    %v128 = vperm.slane %v124, 2
    %v129 = vperm.slane %v124, 3
    %v130 = vperm.slane %v124, 4
    %v131 = vperm.slane %v124, 5
    %v132 = vperm.slane %v124, 6
    %v133 = vperm.slane %v124, 7
    %v206 = vunpack.c.l.b16 %v60
    %v207 = vunpack.c.h.b16 %v60
    %v208 = vunpack.c.l.b16 %v61
    %v209 = vunpack.c.h.b16 %v61
    %v210 = vunpack.c.l.b16 %v62
    %v211 = vunpack.c.h.b16 %v62
    %v212 = vunpack.c.l.b16 %v63
    %v213 = vunpack.c.h.b16 %v63
    %v214 = vunpack.c.l.b16 %v64
    %v215 = vunpack.c.h.b16 %v64
    %v216 = vunpack.c.l.b16 %v65
    %v217 = vunpack.c.h.b16 %v65
    %v218 = vunpack.c.l.b16 %v66
    %v219 = vunpack.c.h.b16 %v66
    %v220 = vunpack.c.l.b16 %v67
    %v221 = vunpack.c.h.b16 %v67
    %v222 = vunpack.c.l.b16 %v68
    %v223 = vunpack.c.h.b16 %v68
    %v224 = vunpack.c.l.b16 %v69
    %v225 = vunpack.c.h.b16 %v69
    %v226 = vunpack.c.l.b16 %v70
    %v227 = vunpack.c.h.b16 %v70
    %v228 = vunpack.c.l.b16 %v71
    %v229 = vunpack.c.h.b16 %v71
    %v230 = vunpack.c.l.b16 %v72
    %v231 = vunpack.c.h.b16 %v72
    %v232 = vunpack.c.l.b16 %v73
    %v233 = vunpack.c.h.b16 %v73
    %v234 = vunpack.c.l.b16 %v74
    %v235 = vunpack.c.h.b16 %v74
    %v236 = vunpack.c.l.b16 %v75
    %v237 = vunpack.c.h.b16 %v75
    %v238 = vunpack.c.l.b16 %v76
    %v239 = vunpack.c.h.b16 %v76
    %v240 = vunpack.c.l.b16 %v77
    %v241 = vunpack.c.h.b16 %v77
    %v242 = vunpack.c.l.b16 %v78
    %v243 = vunpack.c.h.b16 %v78
    %v244 = vunpack.c.l.b16 %v79
    %v245 = vunpack.c.h.b16 %v79
    %v246 = vunpack.c.l.b16 %v80
    %v247 = vunpack.c.h.b16 %v80
    %v248 = vunpack.c.l.b16 %v81
    %v249 = vunpack.c.h.b16 %v81
    %v250 = vunpack.c.l.b16 %v82
    %v251 = vunpack.c.h.b16 %v82
    %v252 = vunpack.c.l.b16 %v83
    %v253 = vunpack.c.h.b16 %v83
    %v254 = vunpack.c.l.b16 %v84
    %v255 = vunpack.c.h.b16 %v84
    %v256 = vunpack.c.l.b16 %v85
    %v257 = vunpack.c.h.b16 %v85
    %v258 = vunpack.c.l.b16 %v86
    %v259 = vunpack.c.h.b16 %v86
    %v260 = vunpack.c.l.b16 %v87
    %v261 = vunpack.c.h.b16 %v87
    %v262 = vunpack.c.l.b16 %v88
    %v263 = vunpack.c.h.b16 %v88
    %v264 = vunpack.c.l.b16 %v89
    %v265 = vunpack.c.h.b16 %v89
    %v266 = vunpack.c.l.b16 %v90
    %v267 = vunpack.c.h.b16 %v90
    %v268 = vunpack.c.l.b16 %v91
    %v269 = vunpack.c.h.b16 %v91
    %v270 = vunpack.c.l.b16 %v92
    %v271 = vunpack.c.h.b16 %v92
    %v272 = vunpack.c.l.b16 %v93
    %v273 = vunpack.c.h.b16 %v93
    %v274 = vunpack.c.l.b16 %v94
    %v275 = vunpack.c.h.b16 %v94
    %v276 = vunpack.c.l.b16 %v95
    %v277 = vunpack.c.h.b16 %v95
    %v278 = vunpack.c.l.b16 %v96
    %v279 = vunpack.c.h.b16 %v96
    %v280 = vunpack.c.l.b16 %v97
    %v281 = vunpack.c.h.b16 %v97
    %v282 = vunpack.c.l.b16 %v98
    %v283 = vunpack.c.h.b16 %v98
    %v284 = vunpack.c.l.b16 %v99
    %v285 = vunpack.c.h.b16 %v99
    %v286 = vunpack.c.l.b16 %v100
    %v287 = vunpack.c.h.b16 %v100
    %v288 = vunpack.c.l.b16 %v101
    %v289 = vunpack.c.h.b16 %v101
    %v290 = vunpack.c.l.b16 %v102
    %v291 = vunpack.c.h.b16 %v102
    %v292 = vunpack.c.l.b16 %v103
    %v293 = vunpack.c.h.b16 %v103
    %v294 = vunpack.c.l.b16 %v104
    %v295 = vunpack.c.h.b16 %v104
    %v296 = vunpack.c.l.b16 %v105
    %v297 = vunpack.c.h.b16 %v105
    %v298 = vunpack.c.l.b16 %v106
    %v299 = vunpack.c.h.b16 %v106
    %v300 = vunpack.c.l.b16 %v107
    %v301 = vunpack.c.h.b16 %v107
    %v302 = vunpack.c.l.b16 %v108
    %v303 = vunpack.c.h.b16 %v108
    %v304 = vunpack.c.l.b16 %v109
    %v305 = vunpack.c.h.b16 %v109
    %v306 = vunpack.c.l.b16 %v110
    %v307 = vunpack.c.h.b16 %v110
    %v308 = vunpack.c.l.b16 %v111
    %v309 = vunpack.c.h.b16 %v111
    %v310 = vunpack.c.l.b16 %v112
    %v311 = vunpack.c.h.b16 %v112
    %v312 = vunpack.c.l.b16 %v113
    %v313 = vunpack.c.h.b16 %v113
    %v314 = vunpack.c.l.b16 %v114
    %v315 = vunpack.c.h.b16 %v114
    %v316 = vunpack.c.l.b16 %v115
    %v317 = vunpack.c.h.b16 %v115
    %v318 = vunpack.c.l.b16 %v116
    %v319 = vunpack.c.h.b16 %v116
    %v320 = vunpack.c.l.b16 %v117
    %v321 = vunpack.c.h.b16 %v117
    %v322 = vunpack.c.l.b16 %v118
    %v323 = vunpack.c.h.b16 %v118
    %v324 = vunpack.c.l.b16 %v119
    %v325 = vunpack.c.h.b16 %v119
    %v326 = vunpack.c.l.b16 %v120
    %v327 = vunpack.c.h.b16 %v120
    %v328 = vunpack.c.l.b16 %v121
    %v329 = vunpack.c.h.b16 %v121
    %v330 = vunpack.c.l.b16 %v122
    %v331 = vunpack.c.h.b16 %v122
    %v332 = vunpack.c.l.b16 %v123
    %v333 = vunpack.c.h.b16 %v123
    %v334 = vpack.c.b16 %v214, %v206
    %v335 = vpack.c.b16 %v215, %v207
    %v336 = vpack.c.b16 %v216, %v208
    %v337 = vpack.c.b16 %v217, %v209
    %v338 = vpack.c.b16 %v218, %v210
    %v339 = vpack.c.b16 %v219, %v211
    %v340 = vpack.c.b16 %v220, %v212
    %v341 = vpack.c.b16 %v221, %v213
    %v342 = vpack.c.b16 %v230, %v222
    %v343 = vpack.c.b16 %v231, %v223
    %v344 = vpack.c.b16 %v232, %v224
    %v345 = vpack.c.b16 %v233, %v225
    %v346 = vpack.c.b16 %v234, %v226
    %v347 = vpack.c.b16 %v235, %v227
    %v348 = vpack.c.b16 %v236, %v228
    %v349 = vpack.c.b16 %v237, %v229
    %v350 = vpack.c.b16 %v246, %v238
    %v351 = vpack.c.b16 %v247, %v239
    %v352 = vpack.c.b16 %v248, %v240
    %v353 = vpack.c.b16 %v249, %v241
    %v354 = vpack.c.b16 %v250, %v242
    %v355 = vpack.c.b16 %v251, %v243
    %v356 = vpack.c.b16 %v252, %v244
    %v357 = vpack.c.b16 %v253, %v245
    %v358 = vpack.c.b16 %v262, %v254
    %v359 = vpack.c.b16 %v263, %v255
    %v360 = vpack.c.b16 %v264, %v256
    %v361 = vpack.c.b16 %v265, %v257
    %v362 = vpack.c.b16 %v266, %v258
    %v363 = vpack.c.b16 %v267, %v259
    %v364 = vpack.c.b16 %v268, %v260
    %v365 = vpack.c.b16 %v269, %v261
    %v366 = vpack.c.b16 %v278, %v270
    %v367 = vpack.c.b16 %v279, %v271
    %v368 = vpack.c.b16 %v280, %v272
    %v369 = vpack.c.b16 %v281, %v273
    %v370 = vpack.c.b16 %v282, %v274
    %v371 = vpack.c.b16 %v283, %v275
    %v372 = vpack.c.b16 %v284, %v276
    %v373 = vpack.c.b16 %v285, %v277
    %v374 = vpack.c.b16 %v294, %v286
    %v375 = vpack.c.b16 %v295, %v287
    %v376 = vpack.c.b16 %v296, %v288
    %v377 = vpack.c.b16 %v297, %v289
    %v378 = vpack.c.b16 %v298, %v290
    %v379 = vpack.c.b16 %v299, %v291
    %v380 = vpack.c.b16 %v300, %v292
    %v381 = vpack.c.b16 %v301, %v293
    %v382 = vpack.c.b16 %v310, %v302
    %v383 = vpack.c.b16 %v311, %v303
    %v384 = vpack.c.b16 %v312, %v304
    %v385 = vpack.c.b16 %v313, %v305
    %v386 = vpack.c.b16 %v314, %v306
    %v387 = vpack.c.b16 %v315, %v307
    %v388 = vpack.c.b16 %v316, %v308
    %v389 = vpack.c.b16 %v317, %v309
    %v390 = vpack.c.b16 %v326, %v318
    %v391 = vpack.c.b16 %v327, %v319
    %v392 = vpack.c.b16 %v328, %v320
    %v393 = vpack.c.b16 %v329, %v321
    %v394 = vpack.c.b16 %v330, %v322
    %v395 = vpack.c.b16 %v331, %v323
    %v396 = vpack.c.b16 %v332, %v324
    %v397 = vpack.c.b16 %v333, %v325
    %462 = vmatpush.bf16.msra.mxu0 %v390
    %463 = vmatpush.bf16.msra.mxu0 %v382
    %464 = vmatpush.bf16.msra.mxu0 %v374
    %465 = vmatpush.bf16.msra.mxu0 %v366
    %466 = vmatpush.bf16.msra.mxu0 %v358
    %467 = vmatpush.bf16.msra.mxu0 %v350
    %468 = vmatpush.bf16.msra.mxu0 %v342
    %469 = vmatpush.bf16.msra.mxu0 %v334
    %470 = vmatmul.bf16.gmra.mxu0 %v59
    %v471 = vpop.f32.mrf.mxu0
    %v472 = vadd.f32 %v126, %v471
    %v473 = vpop.f32.mrf.mxu0
    %474 = vdwg.mxu0
    %475 = vmatpush.bf16.msra.mxu0 %v391
    %476 = vmatpush.bf16.msra.mxu0 %v383
    %477 = vmatpush.bf16.msra.mxu0 %v375
    %478 = vmatpush.bf16.msra.mxu0 %v367
    %479 = vmatpush.bf16.msra.mxu0 %v359
    %480 = vmatpush.bf16.msra.mxu0 %v351
    %481 = vmatpush.bf16.msra.mxu0 %v343
    %482 = vmatpush.bf16.msra.mxu0 %v335
    %483 = vmatmul.bf16.gmra.mxu0 %v59
    %v484 = vpop.f32.mrf.mxu0
    %v485 = vadd.f32 %v127, %v484
    %v486 = vpop.f32.mrf.mxu0
    %487 = vdwg.mxu0
    %488 = vmatpush.bf16.msra.mxu0 %v392
    %489 = vmatpush.bf16.msra.mxu0 %v384
    %490 = vmatpush.bf16.msra.mxu0 %v376
    %491 = vmatpush.bf16.msra.mxu0 %v368
    %492 = vmatpush.bf16.msra.mxu0 %v360
    %493 = vmatpush.bf16.msra.mxu0 %v352
    %494 = vmatpush.bf16.msra.mxu0 %v344
    %495 = vmatpush.bf16.msra.mxu0 %v336
    %496 = vmatmul.bf16.gmra.mxu0 %v59
    %v497 = vpop.f32.mrf.mxu0
    %v498 = vadd.f32 %v128, %v497
    %v499 = vpop.f32.mrf.mxu0
    %500 = vdwg.mxu0
    %501 = vmatpush.bf16.msra.mxu0 %v393
    %502 = vmatpush.bf16.msra.mxu0 %v385
    %503 = vmatpush.bf16.msra.mxu0 %v377
    %504 = vmatpush.bf16.msra.mxu0 %v369
    %505 = vmatpush.bf16.msra.mxu0 %v361
    %506 = vmatpush.bf16.msra.mxu0 %v353
    %507 = vmatpush.bf16.msra.mxu0 %v345
    %508 = vmatpush.bf16.msra.mxu0 %v337
    %509 = vmatmul.bf16.gmra.mxu0 %v59
    %v510 = vpop.f32.mrf.mxu0
    %v511 = vadd.f32 %v129, %v510
    %v512 = vpop.f32.mrf.mxu0
    %513 = vdwg.mxu0
    %514 = vmatpush.bf16.msra.mxu0 %v394
    %515 = vmatpush.bf16.msra.mxu0 %v386
    %516 = vmatpush.bf16.msra.mxu0 %v378
    %517 = vmatpush.bf16.msra.mxu0 %v370
    %518 = vmatpush.bf16.msra.mxu0 %v362
    %519 = vmatpush.bf16.msra.mxu0 %v354
    %520 = vmatpush.bf16.msra.mxu0 %v346
    %521 = vmatpush.bf16.msra.mxu0 %v338
    %522 = vmatmul.bf16.gmra.mxu0 %v59
    %v523 = vpop.f32.mrf.mxu0
    %v524 = vadd.f32 %v130, %v523
    %v525 = vpop.f32.mrf.mxu0
    %526 = vdwg.mxu0
    %527 = vmatpush.bf16.msra.mxu0 %v395
    %528 = vmatpush.bf16.msra.mxu0 %v387
    %529 = vmatpush.bf16.msra.mxu0 %v379
    %530 = vmatpush.bf16.msra.mxu0 %v371
    %531 = vmatpush.bf16.msra.mxu0 %v363
    %532 = vmatpush.bf16.msra.mxu0 %v355
    %533 = vmatpush.bf16.msra.mxu0 %v347
    %534 = vmatpush.bf16.msra.mxu0 %v339
    %535 = vmatmul.bf16.gmra.mxu0 %v59
    %v536 = vpop.f32.mrf.mxu0
    %v537 = vadd.f32 %v131, %v536
    %v538 = vpop.f32.mrf.mxu0
    %539 = vdwg.mxu0
    %540 = vmatpush.bf16.msra.mxu0 %v396
    %541 = vmatpush.bf16.msra.mxu0 %v388
    %542 = vmatpush.bf16.msra.mxu0 %v380
    %543 = vmatpush.bf16.msra.mxu0 %v372
    %544 = vmatpush.bf16.msra.mxu0 %v364
    %545 = vmatpush.bf16.msra.mxu0 %v356
    %546 = vmatpush.bf16.msra.mxu0 %v348
    %547 = vmatpush.bf16.msra.mxu0 %v340
    %548 = vmatmul.bf16.gmra.mxu0 %v59
    %v549 = vpop.f32.mrf.mxu0
    %v550 = vadd.f32 %v132, %v549
    %v551 = vpop.f32.mrf.mxu0
    %552 = vdwg.mxu0
    %553 = vmatpush.bf16.msra.mxu0 %v397
    %554 = vmatpush.bf16.msra.mxu0 %v389
    %555 = vmatpush.bf16.msra.mxu0 %v381
    %556 = vmatpush.bf16.msra.mxu0 %v373
    %557 = vmatpush.bf16.msra.mxu0 %v365
    %558 = vmatpush.bf16.msra.mxu0 %v357
    %559 = vmatpush.bf16.msra.mxu0 %v349
    %560 = vmatpush.bf16.msra.mxu0 %v341
    %561 = vmatmul.bf16.gmra.mxu0 %v59
    %v562 = vpop.f32.mrf.mxu0
    %v563 = vadd.f32 %v133, %v562
    %v564 = vpop.f32.mrf.mxu0
    %565 = vdwg.mxu0
    %v566 = vmax.f32 %v472, 0.0
    %v567 = vmax.f32 %v485, 0.0
    %v568 = vmax.f32 %v498, 0.0
    %v569 = vmax.f32 %v511, 0.0
    %v570 = vmax.f32 %v524, 0.0
    %v571 = vmax.f32 %v537, 0.0
    %v572 = vmax.f32 %v550, 0.0
    %v573 = vmax.f32 %v563, 0.0
    %574 = vst [vmem:[#allocation8] sm:$0xff] %v566
    %575 = vst [vmem:[#allocation8 + $0x8] sm:$0xff] %v567
    %576 = vst [vmem:[#allocation8 + $0x10] sm:$0xff] %v568
    %577 = vst [vmem:[#allocation8 + $0x18] sm:$0xff] %v569
    %578 = vst [vmem:[#allocation8 + $0x20] sm:$0xff] %v570
    %579 = vst [vmem:[#allocation8 + $0x28] sm:$0xff] %v571
    %580 = vst [vmem:[#allocation8 + $0x30] sm:$0xff] %v572
    %581 = vst [vmem:[#allocation8 + $0x38] sm:$0xff] %v573
    // Predicated region
    $region26: #{tpu_custom_call.1} parent=1 // pred_check
      _
    $region27: #{tpu_custom_call.1} parent=1 // pred_check_branch
      %583 = sbr.rel (0) target = $region29
    $region28: #{tpu_custom_call.1} parent=1 // pred_region
      %585 = vsyncadd [#allocation4], 0
      %s587 = sshll.u32 [#allocation8], 4
      %s588 = int_to_ptr.vmem [resolvable:$true] %s587
      %s589 = sshll.u32 %s3, 4
      %s590 = int_to_ptr.hbm [resolvable:$true] %s589
      %592 = dma.vmem_to_hbm [thread:$0]  %s588, 1024, %s590, [#allocation4]
    $region29: #{tpu_custom_call.1} parent=1 // pred_fallthru
      _
    // Predicated region
    $region30: #{tpu_custom_call.1} parent=1 // pred_check
      _
    $region31: #{tpu_custom_call.1} parent=1 // pred_check_branch
      %594 = sbr.rel (0) target = $region33
    $region32: #{tpu_custom_call.1} parent=1 // pred_region
      %596 = dma.done [#allocation4], 1024
    $region33: #{tpu_custom_call.1} parent=1 // pred_fallthru
      _
    %597 = vsyncpa [#allocation3], 1
    %598 = vsyncpa [#allocation6], 1
    %599 = vsyncpa [#allocation4], 1

</llo_original>
